<compile_context>
chip_gen: v5e
topology: v5e:2x2
jax: 0.10.0
libtpu: 0.0.40
codegen_flags: <defaults>
</compile_context>

<pallas_src>
import functools

import jax
import jax.numpy as jnp
from jax.experimental import pallas as pl
from jax.experimental.pallas import tpu as pltpu


def _cnns_kernel(x_ref, w1_ref, w2_ref, c_ref, wf_ref, d_ref, o_ref):
    x = x_ref[...]                                          # (TB, 1) f32

    # conv1(k=1,pad=1)+maxpool at L==1, bias folded forward: relu(x * w1_row).
    # K=1 "matmul" done on the VPU as a broadcasted outer product.
    h = jnp.maximum(x * w1_ref[...], 0.0)                   # (TB, 64)

    # dropout(p=0.01): identity under eval/inference semantics.

    # conv2(k=1,pad=1)+maxpool, with conv1 bias pushed through w2 (c = b1@w2).
    h = jnp.maximum(
        jnp.dot(h, w2_ref[...], preferred_element_type=jnp.float32) + c_ref[...],
        0.0)                                                # (TB, 32)

    # flatten (L==1 -> no-op), then fc2(fc1(.)) fused into one affine map with
    # every remaining bias folded into d.  Output block is exactly (TB, out).
    o_ref[...] = (jnp.dot(h, wf_ref[...], preferred_element_type=jnp.float32)
                  + d_ref[...]).astype(o_ref.dtype)


def _round_up(n, m):
    return ((n + m - 1) // m) * m


@functools.partial(jax.jit, static_argnames=("block_b",))
def cnns_predictor_forward(x_ncl, params, *, block_b=None):
    """x_ncl: (B, 1, 1) float32 (PyTorch NCL conv layout). Returns (B, output_size)."""
    w1, b1, w2, b2, wf1, bf1, wf2, bf2 = params
    B = x_ncl.shape[0]
    assert x_ncl.shape[1] == 1 and x_ncl.shape[2] == 1, \
        "CNNSPredictor only admits temporal length 1 (fc1 expects 32 flat features)"
    out_size = wf2.shape[1]

    if block_b is None:
        # ~2 grid steps for any B (even split -> both v7x TCs busy), capped at
        # 4096 rows so double-buffered tiles stay under the v5e 16 MiB scoped
        # VMEM default and v5e/v6e's serial grid stays at a handful of steps.
        block_b = min(max(_round_up(pl.cdiv(B, 2), 8), 8), 4096)

    # --- trace-time parameter fusion (runs once under jit) --------------------
    wf = wf1 @ wf2                         # (32, out_size)  fc1∘fc2 weight
    c = b1 @ w2                            # (1, 32)  conv1 bias pushed through conv2
    d = b2 @ wf + bf1 @ wf2 + bf2          # (1, out_size)  all remaining biases

    x = x_ncl.reshape(B, 1)                # no host-side padding; ragged grid below

    grid = (pl.cdiv(B, block_b),)
    full = lambda i: (0, 0)                # weights: one block, constant index -> no re-DMA

    flops = 2 * B * (64 + 64 * 32 + 32 * out_size)
    bytes_accessed = (B * 4 * (1 + out_size)
                      + 4 * (w1.size + w2.size + c.size + wf.size + d.size))

    out = pl.pallas_call(
        _cnns_kernel,
        out_shape=jax.ShapeDtypeStruct((B, out_size), jnp.float32),
        grid_spec=pltpu.PrefetchScalarGridSpec(
            num_scalar_prefetch=0,
            grid=grid,
            in_specs=[
                pl.BlockSpec((block_b, 1), lambda i: (i, 0)),  # x (lane-sparse, tiny)
                pl.BlockSpec(w1.shape, full),                  # conv1 weight (1, 64)
                pl.BlockSpec(w2.shape, full),                  # conv2 weight (64, 32)
                pl.BlockSpec(c.shape, full),                   # folded conv bias (1, 32)
                pl.BlockSpec(wf.shape, full),                  # fused fc weight (32, out)
                pl.BlockSpec(d.shape, full),                   # folded fc bias   (1, out)
            ],
            out_specs=pl.BlockSpec((block_b, out_size), lambda i: (i, 0)),
        ),
        compiler_params=pltpu.CompilerParams(
            dimension_semantics=("parallel",)),
        cost_estimate=pl.CostEstimate(
            flops=int(flops), transcendentals=0,
            bytes_accessed=int(bytes_accessed)),
    )(x, w1, w2, c, wf, d)

    return out


def init_params(key, output_size):
    """Deterministic synthetic parameters with the shapes nn.Module.__init__ implies,
    already transposed into kernel layout ((C_in, C_out) weights, (1, C_out) biases)."""
    ks = jax.random.split(key, 8)
    s = 0.1
    w1 = jax.random.normal(ks[0], (1, 64), jnp.float32) * s    # conv1.weight (64,1,1) -> (1,64)
    b1 = jax.random.normal(ks[1], (1, 64), jnp.float32) * s
    w2 = jax.random.normal(ks[2], (64, 32), jnp.float32) * s   # conv2.weight (32,64,1) -> (64,32)
    b2 = jax.random.normal(ks[3], (1, 32), jnp.float32) * s
    wf1 = jax.random.normal(ks[4], (32, 64), jnp.float32) * s  # fc1.weight (64,32) -> (32,64)
    bf1 = jax.random.normal(ks[5], (1, 64), jnp.float32) * s
    wf2 = jax.random.normal(ks[6], (64, output_size), jnp.float32) * s  # fc2.weight -> (64,out)
    bf2 = jax.random.normal(ks[7], (1, output_size), jnp.float32) * s
    return (w1, b1, w2, b2, wf1, bf1, wf2, bf2)


def reference_forward(x_ncl, params):
    """Pure-JAX reference that mirrors the PyTorch ops literally (NCL layout)."""
    w1, b1, w2, b2, wf1, bf1, wf2, bf2 = params

    def conv1d_k1_pad1(x, w_in_out, b_row):
        # x: (B, Cin, L); w_in_out: (Cin, Cout); b_row: (1, Cout)
        B, _, L = x.shape
        y = jnp.einsum('bil,io->bol', x, w_in_out) + b_row.T[None, :, :]   # (B, Cout, L)
        pad = jnp.broadcast_to(b_row.T[None, :, :], (B, w_in_out.shape[1], 1))
        return jnp.concatenate([pad, y, pad], axis=-1)                     # (B, Cout, L+2)

    def maxpool2(x):
        B, C, L = x.shape
        L2 = L // 2
        return jnp.max(x[..., :L2 * 2].reshape(B, C, L2, 2), axis=-1)

    h = maxpool2(conv1d_k1_pad1(x_ncl, w1, b1))          # dropout: identity (eval)
    h = maxpool2(conv1d_k1_pad1(h, w2, b2))
    h = h.reshape(h.shape[0], -1)                        # (B, 32)
    h = h @ wf1 + bf1
    return h @ wf2 + bf2


if __name__ == "__main__":
    key = jax.random.PRNGKey(0)
    k_x, k_p = jax.random.split(key)

    batch = 50              # small; not a multiple of 8 -> exercises the ragged last block
    output_size = 8
    # input_size is unused by the PyTorch forward; the architecture forces L == 1.
    x = jax.random.normal(k_x, (batch, 1, 1), jnp.float32)   # NCL, like PyTorch Conv1d input
    params = init_params(k_p, output_size)

    # TODO(synk): Dropout(p=0.01) is treated as identity (eval/inference mode only).
    out = cnns_predictor_forward(x, params)                   # auto block_b -> 2 grid steps
    out = jax.block_until_ready(out)

    ref = reference_forward(x, params)
    assert out.shape == (batch, output_size)
    assert jnp.allclose(out, ref, atol=1e-5, rtol=1e-5), "Pallas output mismatch vs JAX reference"

    print("KERNEL_OK")
</pallas_src>

<mosaic_0001>
module attributes {stable_mosaic.version = 11 : i64} {
  func.func @_cnns_kernel(%arg0: i32, %arg1: memref<32x1xf32, #tpu.memory_space<vmem>>, %arg2: memref<1x64xf32, #tpu.memory_space<vmem>>, %arg3: memref<64x32xf32, #tpu.memory_space<vmem>>, %arg4: memref<1x32xf32, #tpu.memory_space<vmem>>, %arg5: memref<32x8xf32, #tpu.memory_space<vmem>>, %arg6: memref<1x8xf32, #tpu.memory_space<vmem>>, %arg7: memref<32x8xf32, #tpu.memory_space<vmem>>) attributes {dimension_semantics = [#tpu.dimension_semantics<parallel>], iteration_bounds = array<i64: 2>, scalar_prefetch = 0 : i64, scratch_operands = 0 : i64, tpu.core_type = #tpu.core_type<tc>, window_params = [{transform_indices = @transform_0, window_bounds = array<i64: 32, 1>}, {pipeline_mode = #tpu.pipeline_mode<synchronous>, transform_indices = @transform_1, window_bounds = array<i64: 1, 64>}, {pipeline_mode = #tpu.pipeline_mode<synchronous>, transform_indices = @transform_2, window_bounds = array<i64: 64, 32>}, {pipeline_mode = #tpu.pipeline_mode<synchronous>, transform_indices = @transform_3, window_bounds = array<i64: 1, 32>}, {pipeline_mode = #tpu.pipeline_mode<synchronous>, transform_indices = @transform_4, window_bounds = array<i64: 32, 8>}, {pipeline_mode = #tpu.pipeline_mode<synchronous>, transform_indices = @transform_5, window_bounds = array<i64: 1, 8>}, {transform_indices = @transform_6, window_bounds = array<i64: 32, 8>}]} {
    %c0 = arith.constant 0 : index
    %c0_0 = arith.constant 0 : index
    %0 = vector.load %arg1[%c0, %c0_0] : memref<32x1xf32, #tpu.memory_space<vmem>>, vector<32x1xf32>
    %c0_1 = arith.constant 0 : index
    %c0_2 = arith.constant 0 : index
    %1 = vector.load %arg2[%c0_1, %c0_2] : memref<1x64xf32, #tpu.memory_space<vmem>>, vector<1x64xf32>
    %2 = vector.broadcast %0 : vector<32x1xf32> to vector<32x64xf32>
    %3 = vector.broadcast %1 : vector<1x64xf32> to vector<32x64xf32>
    %4 = arith.mulf %2, %3 : vector<32x64xf32>
    %cst = arith.constant 0.000000e+00 : f32
    %5 = vector.broadcast %cst : f32 to vector<32x64xf32>
    %6 = arith.maximumf %4, %5 : vector<32x64xf32>
    %c0_3 = arith.constant 0 : index
    %c0_4 = arith.constant 0 : index
    %7 = vector.load %arg3[%c0_3, %c0_4] : memref<64x32xf32, #tpu.memory_space<vmem>>, vector<64x32xf32>
    %cst_5 = arith.constant dense<0.000000e+00> : vector<32x32xf32>
    %8 = tpu.matmul %6, %7, %cst_5 {dimension_numbers = #tpu.dot_dimension_numbers<[1], [0], [0], [1], [0, 0, 1, 1], [], []>} : vector<32x64xf32>, vector<64x32xf32>, vector<32x32xf32> -> vector<32x32xf32>
    %c0_6 = arith.constant 0 : index
    %c0_7 = arith.constant 0 : index
    %9 = vector.load %arg4[%c0_6, %c0_7] : memref<1x32xf32, #tpu.memory_space<vmem>>, vector<1x32xf32>
    %10 = vector.broadcast %9 : vector<1x32xf32> to vector<32x32xf32>
    %11 = arith.addf %8, %10 : vector<32x32xf32>
    %cst_8 = arith.constant 0.000000e+00 : f32
    %12 = vector.broadcast %cst_8 : f32 to vector<32x32xf32>
    %13 = arith.maximumf %11, %12 : vector<32x32xf32>
    %c0_9 = arith.constant 0 : index
    %c0_10 = arith.constant 0 : index
    %14 = vector.load %arg5[%c0_9, %c0_10] : memref<32x8xf32, #tpu.memory_space<vmem>>, vector<32x8xf32>
    %cst_11 = arith.constant dense<0.000000e+00> : vector<32x8xf32>
    %15 = tpu.matmul %13, %14, %cst_11 {dimension_numbers = #tpu.dot_dimension_numbers<[1], [0], [0], [1], [0, 0, 1, 1], [], []>} : vector<32x32xf32>, vector<32x8xf32>, vector<32x8xf32> -> vector<32x8xf32>
    %c0_12 = arith.constant 0 : index
    %c0_13 = arith.constant 0 : index
    %16 = vector.load %arg6[%c0_12, %c0_13] : memref<1x8xf32, #tpu.memory_space<vmem>>, vector<1x8xf32>
    %17 = vector.broadcast %16 : vector<1x8xf32> to vector<32x8xf32>
    %18 = arith.addf %15, %17 : vector<32x8xf32>
    %c0_14 = arith.constant 0 : index
    %c0_15 = arith.constant 0 : index
    %19 = vector.load %arg7[%c0_14, %c0_15] : memref<32x8xf32, #tpu.memory_space<vmem>>, vector<32x8xf32>
    tpu.vector_store %arg7[%c0_14, %c0_15], %18 {strides = array<i32>} : memref<32x8xf32, #tpu.memory_space<vmem>>, vector<32x8xf32>,
    return
  }
  func.func @transform_0(%arg0: i32) -> (i32, i32) {
    %c0_i32 = arith.constant 0 : i32
    %c0_i32_0 = arith.constant 0 : i32
    return %arg0, %c0_i32 : i32, i32
  }
  func.func @transform_1(%arg0: i32) -> (i32, i32) {
    %c0_i32 = arith.constant 0 : i32
    %c0_i32_0 = arith.constant 0 : i32
    %c0_i32_1 = arith.constant 0 : i32
    return %c0_i32, %c0_i32_0 : i32, i32
  }
  func.func @transform_2(%arg0: i32) -> (i32, i32) {
    %c0_i32 = arith.constant 0 : i32
    %c0_i32_0 = arith.constant 0 : i32
    %c0_i32_1 = arith.constant 0 : i32
    return %c0_i32, %c0_i32_0 : i32, i32
  }
  func.func @transform_3(%arg0: i32) -> (i32, i32) {
    %c0_i32 = arith.constant 0 : i32
    %c0_i32_0 = arith.constant 0 : i32
    %c0_i32_1 = arith.constant 0 : i32
    return %c0_i32, %c0_i32_0 : i32, i32
  }
  func.func @transform_4(%arg0: i32) -> (i32, i32) {
    %c0_i32 = arith.constant 0 : i32
    %c0_i32_0 = arith.constant 0 : i32
    %c0_i32_1 = arith.constant 0 : i32
    return %c0_i32, %c0_i32_0 : i32, i32
  }
  func.func @transform_5(%arg0: i32) -> (i32, i32) {
    %c0_i32 = arith.constant 0 : i32
    %c0_i32_0 = arith.constant 0 : i32
    %c0_i32_1 = arith.constant 0 : i32
    return %c0_i32, %c0_i32_0 : i32, i32
  }
  func.func @transform_6(%arg0: i32) -> (i32, i32) {
    %c0_i32 = arith.constant 0 : i32
    %c0_i32_0 = arith.constant 0 : i32
    return %arg0, %c0_i32 : i32, i32
  }
}

</mosaic_0001>

<llo_original>
// kernel: cnns_predictor_forward.1
$region0: #{cnns_predictor_forward.1}
  #allocation0 [shape = 'u32[]', space=smem, size = 0x4, offset = 0x4, fixed_abs, tag = 'smem constant byte address 0x4 - core index']
  #allocation1 [shape = 'u32[72,128]{1,0:T(1,128)}', space=vmem, size = 0x9000, scoped, tag = 'internal scratch']
  %s0 = inlined_call_operand.vmem [shape: f32[50,1], index: 0, kind: input, shape index: {}]
  %s1 = inlined_call_operand.vmem [shape: f32[1,64], index: 1, kind: input, shape index: {}]
  %s2 = inlined_call_operand.vmem [shape: f32[64,32], index: 2, kind: input, shape index: {}]
  %s3 = inlined_call_operand.vmem [shape: f32[1,32], index: 3, kind: input, shape index: {}]
  %s4 = inlined_call_operand.vmem [shape: f32[32,8], index: 4, kind: input, shape index: {}]
  %s5 = inlined_call_operand.vmem [shape: f32[1,8], index: 5, kind: input, shape index: {}]
  %s6 = inlined_call_operand.vmem [shape: f32[50,8], index: 6, kind: output, shape index: {}]
  %s7 = sld [smem:[#allocation0]]
  $region105: #{cnns_predictor_forward.1} parent=0
    _
  %s9 = ssub.s32 1, %s7
  %s10 = scalar_select 0, %s9, %s7
  $region1: #{cnns_predictor_forward.1} parent=0
    #allocation2 [shape = 'u8[32768]{0}', space=vmem, size = 0x8000, scoped, tag = 'output window, operand 0']
    loop: start=0, step=1, limit=4
    $region2: #{cnns_predictor_forward.1} parent=1 // loop_pre_header
      _
    $region3: #{cnns_predictor_forward.1} parent=1 // loop_header
      %s12 = sphi 0, %s16
      %p13 = scmp.ge.s32.totalorder %s12, 4
      %s22 = sphi 0, %s24
      %s25 = sphi 0, %s22
      %s26 = sphi 0, %s25
      %s42 = sphi 0, %s26
      %s46 = sphi 0, %s46
      %s48 = sphi 0, %s46
      %s49 = sphi 0, %s48
      %s63 = sphi 0, %s49
      %s67 = sphi 0, %s67
      %s69 = sphi 0, %s67
      %s70 = sphi 0, %s69
      %s84 = sphi 0, %s70
      %s88 = sphi 0, %s88
      %s90 = sphi 0, %s88
      %s91 = sphi 0, %s90
      %s105 = sphi 0, %s91
      %s109 = sphi 0, %s109
      %s111 = sphi 0, %s109
      %s112 = sphi 0, %s111
      %s126 = sphi 0, %s112
      %s130 = sphi 0, %s130
      %s132 = sphi 0, %s130
      %s133 = sphi 0, %s132
      %s147 = sphi 0, %s133
      %s153 = sphi 0, %s155
      %s156 = sphi 0, %s153
      %s157 = sphi 0, %s156
      %s173 = sphi 0, %s157
    $region4: #{cnns_predictor_forward.1} parent=1 // loop_header_branch
      %15 = sbr.rel (%p13) target = $region8
    $region5: #{cnns_predictor_forward.1} parent=1 // loop_body
      %s17 = ssub.s32 %s12, 1
      %s18 = ssub.s32 %s12, 2
      %s19 = sadd.s32 %s12, 1
      %s20 = ssub.s32 %s12, %s19
      %p21 = scmp.eq.s32.totalorder %s20, 0
      %s23 = sadd.s32 %s22, 1
      %s24 = scalar_select %p21, %s22, %s23
      %p27 = pneg %p21
      %p28 = scmp.eq.s32.totalorder %s12, 1
      %p29 = por %p27, %p28
      %p30 = scmp.ne.s32.totalorder %s22, %s25
      %p31 = scmp.eq.s32.totalorder %s12, 0
      %p32 = por %p30, %p31
      %p33 = scmp.ne.s32.totalorder %s22, %s25
      %p34 = scmp.eq.s32.totalorder %s17, 1
      %p35 = por %p33, %p34
      %p36 = scmp.ne.s32.totalorder %s25, %s26
      %p37 = scmp.eq.s32.totalorder %s17, 0
      %p38 = por %p36, %p37
      %p39 = scmp.ne.s32.totalorder %s25, %s26
      %p40 = scmp.eq.s32.totalorder %s18, 1
      %p41 = por %p39, %p40
      %p43 = scmp.ne.s32.totalorder %s26, %s42
      %p44 = scmp.eq.s32.totalorder %s18, 0
      %p45 = por %p43, %p44
      %s47 = sadd.s32 %s46, 1
      %p50 = scmp.eq.s32.totalorder %s12, 1
      %p51 = scmp.ne.s32.totalorder %s46, %s48
      %p52 = scmp.eq.s32.totalorder %s12, 0
      %p53 = por %p51, %p52
      %p54 = scmp.ne.s32.totalorder %s46, %s48
      %p55 = scmp.eq.s32.totalorder %s17, 1
      %p56 = por %p54, %p55
      %p57 = scmp.ne.s32.totalorder %s48, %s49
      %p58 = scmp.eq.s32.totalorder %s17, 0
      %p59 = por %p57, %p58
      %p60 = scmp.ne.s32.totalorder %s48, %s49
      %p61 = scmp.eq.s32.totalorder %s18, 1
      %p62 = por %p60, %p61
      %p64 = scmp.ne.s32.totalorder %s49, %s63
      %p65 = scmp.eq.s32.totalorder %s18, 0
      %p66 = por %p64, %p65
      %s68 = sadd.s32 %s67, 1
      %p71 = scmp.eq.s32.totalorder %s12, 1
      %p72 = scmp.ne.s32.totalorder %s67, %s69
      %p73 = scmp.eq.s32.totalorder %s12, 0
      %p74 = por %p72, %p73
      %p75 = scmp.ne.s32.totalorder %s67, %s69
      %p76 = scmp.eq.s32.totalorder %s17, 1
      %p77 = por %p75, %p76
      %p78 = scmp.ne.s32.totalorder %s69, %s70
      %p79 = scmp.eq.s32.totalorder %s17, 0
      %p80 = por %p78, %p79
      %p81 = scmp.ne.s32.totalorder %s69, %s70
      %p82 = scmp.eq.s32.totalorder %s18, 1
      %p83 = por %p81, %p82
      %p85 = scmp.ne.s32.totalorder %s70, %s84
      %p86 = scmp.eq.s32.totalorder %s18, 0
      %p87 = por %p85, %p86
      %s89 = sadd.s32 %s88, 1
      %p92 = scmp.eq.s32.totalorder %s12, 1
      %p93 = scmp.ne.s32.totalorder %s88, %s90
      %p94 = scmp.eq.s32.totalorder %s12, 0
      %p95 = por %p93, %p94
      %p96 = scmp.ne.s32.totalorder %s88, %s90
      %p97 = scmp.eq.s32.totalorder %s17, 1
      %p98 = por %p96, %p97
      %p99 = scmp.ne.s32.totalorder %s90, %s91
      %p100 = scmp.eq.s32.totalorder %s17, 0
      %p101 = por %p99, %p100
      %p102 = scmp.ne.s32.totalorder %s90, %s91
      %p103 = scmp.eq.s32.totalorder %s18, 1
      %p104 = por %p102, %p103
      %p106 = scmp.ne.s32.totalorder %s91, %s105
      %p107 = scmp.eq.s32.totalorder %s18, 0
      %p108 = por %p106, %p107
      %s110 = sadd.s32 %s109, 1
      %p113 = scmp.eq.s32.totalorder %s12, 1
      %p114 = scmp.ne.s32.totalorder %s109, %s111
      %p115 = scmp.eq.s32.totalorder %s12, 0
      %p116 = por %p114, %p115
      %p117 = scmp.ne.s32.totalorder %s109, %s111
      %p118 = scmp.eq.s32.totalorder %s17, 1
      %p119 = por %p117, %p118
      %p120 = scmp.ne.s32.totalorder %s111, %s112
      %p121 = scmp.eq.s32.totalorder %s17, 0
      %p122 = por %p120, %p121
      %p123 = scmp.ne.s32.totalorder %s111, %s112
      %p124 = scmp.eq.s32.totalorder %s18, 1
      %p125 = por %p123, %p124
      %p127 = scmp.ne.s32.totalorder %s112, %s126
      %p128 = scmp.eq.s32.totalorder %s18, 0
      %p129 = por %p127, %p128
      %s131 = sadd.s32 %s130, 1
      %p134 = scmp.eq.s32.totalorder %s12, 1
      %p135 = scmp.ne.s32.totalorder %s130, %s132
      %p136 = scmp.eq.s32.totalorder %s12, 0
      %p137 = por %p135, %p136
      %p138 = scmp.ne.s32.totalorder %s130, %s132
      %p139 = scmp.eq.s32.totalorder %s17, 1
      %p140 = por %p138, %p139
      %p141 = scmp.ne.s32.totalorder %s132, %s133
      %p142 = scmp.eq.s32.totalorder %s17, 0
      %p143 = por %p141, %p142
      %p144 = scmp.ne.s32.totalorder %s132, %s133
      %p145 = scmp.eq.s32.totalorder %s18, 1
      %p146 = por %p144, %p145
      %p148 = scmp.ne.s32.totalorder %s133, %s147
      %p149 = scmp.eq.s32.totalorder %s18, 0
      %p150 = por %p148, %p149
      %s151 = ssub.s32 %s12, %s19
      %p152 = scmp.eq.s32.totalorder %s151, 0
      %s154 = sadd.s32 %s153, 1
      %s155 = scalar_select %p152, %s153, %s154
      %p158 = pneg %p152
      %p159 = scmp.eq.s32.totalorder %s12, 1
      %p160 = por %p158, %p159
      %p161 = scmp.ne.s32.totalorder %s153, %s156
      %p162 = scmp.eq.s32.totalorder %s12, 0
      %p163 = por %p161, %p162
      %p164 = scmp.ne.s32.totalorder %s153, %s156
      %p165 = scmp.eq.s32.totalorder %s17, 1
      %p166 = por %p164, %p165
      %p167 = scmp.ne.s32.totalorder %s156, %s157
      %p168 = scmp.eq.s32.totalorder %s17, 0
      %p169 = por %p167, %p168
      %p170 = scmp.ne.s32.totalorder %s156, %s157
      %p171 = scmp.eq.s32.totalorder %s18, 1
      %p172 = por %p170, %p171
      %p174 = scmp.ne.s32.totalorder %s157, %s173
      %p175 = scmp.eq.s32.totalorder %s18, 0
      %p176 = por %p174, %p175
      %p177 = scmp.le.s32.totalorder 1, %s12
      %p178 = scmp.lt.s32.totalorder %s12, 3
      %p179 = pnand %p177, %p178
      %p180 = pneg %p179
      // Predicated region
      $region9: #{cnns_predictor_forward.1} parent=5 // pred_check
        _
      $region10: #{cnns_predictor_forward.1} parent=5 // pred_check_branch
        %182 = sbr.rel (%p179) target = $region12
      $region11: #{cnns_predictor_forward.1} parent=5 // pred_region
        %s183 = ssub.s32 %s12, 1
        // Predicated region
        $region13: #{cnns_predictor_forward.1} parent=11 // pred_check
          %p184 = pneg %p59
        $region14: #{cnns_predictor_forward.1} parent=11 // pred_check_branch
          %186 = sbr.rel (%p184) target = $region16
        $region15: #{cnns_predictor_forward.1} parent=11 // pred_region
          _
        $region16: #{cnns_predictor_forward.1} parent=11 // pred_fallthru
          _
        // Predicated region
        $region17: #{cnns_predictor_forward.1} parent=11 // pred_check
          %p187 = pneg %p80
        $region18: #{cnns_predictor_forward.1} parent=11 // pred_check_branch
          %189 = sbr.rel (%p187) target = $region20
        $region19: #{cnns_predictor_forward.1} parent=11 // pred_region
          _
        $region20: #{cnns_predictor_forward.1} parent=11 // pred_fallthru
          _
        // Predicated region
        $region21: #{cnns_predictor_forward.1} parent=11 // pred_check
          %p190 = pneg %p101
        $region22: #{cnns_predictor_forward.1} parent=11 // pred_check_branch
          %192 = sbr.rel (%p190) target = $region24
        $region23: #{cnns_predictor_forward.1} parent=11 // pred_region
          _
        $region24: #{cnns_predictor_forward.1} parent=11 // pred_fallthru
          _
        // Predicated region
        $region25: #{cnns_predictor_forward.1} parent=11 // pred_check
          %p193 = pneg %p122
        $region26: #{cnns_predictor_forward.1} parent=11 // pred_check_branch
          %195 = sbr.rel (%p193) target = $region28
        $region27: #{cnns_predictor_forward.1} parent=11 // pred_region
          _
        $region28: #{cnns_predictor_forward.1} parent=11 // pred_fallthru
          _
        // Predicated region
        $region29: #{cnns_predictor_forward.1} parent=11 // pred_check
          %p196 = pneg %p143
        $region30: #{cnns_predictor_forward.1} parent=11 // pred_check_branch
          %198 = sbr.rel (%p196) target = $region32
        $region31: #{cnns_predictor_forward.1} parent=11 // pred_region
          _
        $region32: #{cnns_predictor_forward.1} parent=11 // pred_fallthru
          _
      $region12: #{cnns_predictor_forward.1} parent=5 // pred_fallthru
        _
      %p199 = scmp.lt.s32.totalorder %s12, 2
      // Predicated region
      $region33: #{cnns_predictor_forward.1} parent=5 // pred_check
        %p200 = pneg %p199
      $region34: #{cnns_predictor_forward.1} parent=5 // pred_check_branch
        %202 = sbr.rel (%p200) target = $region36
      $region35: #{cnns_predictor_forward.1} parent=5 // pred_region
        // Predicated region
        $region37: #{cnns_predictor_forward.1} parent=35 // pred_check
          %p203 = pneg %p32
        $region38: #{cnns_predictor_forward.1} parent=35 // pred_check_branch
          %205 = sbr.rel (%p203) target = $region40
        $region39: #{cnns_predictor_forward.1} parent=35 // pred_region
          %s206 = smul.u32 4, %s12
          %s207 = ssub.s32 7, %s206
          %p208 = scmp.lt.s32.totalorder %s207, 4
          %s209 = scalar_select %p208, %s207, 4
          %s210 = smul.u32 8, %s209
          %p211 = scmp.lt.s32.totalorder %s206, 6
          %s212 = scalar_select %p211, %s206, 6
          %s213 = smul.addr %s212, 8
          %s214 = scalar_lea.vmem %s0, %s213
          %s215 = smul.u32 4, %s12
          %s216 = ssub.s32 7, %s215
          %p217 = scmp.lt.s32.totalorder %s216, 4
          %s218 = scalar_select %p217, %s216, 4
          %s219 = smul.u32 8, %s218
        $region40: #{cnns_predictor_forward.1} parent=35 // pred_fallthru
          _
      $region36: #{cnns_predictor_forward.1} parent=5 // pred_fallthru
        _
      %p220 = scmp.le.s32.totalorder 1, %s12
      %p221 = scmp.lt.s32.totalorder %s12, 3
      %p222 = pnand %p220, %p221
      %p223 = pneg %p222
      // Predicated region
      $region41: #{cnns_predictor_forward.1} parent=5 // pred_check
        _
      $region42: #{cnns_predictor_forward.1} parent=5 // pred_check_branch
        %225 = sbr.rel (%p222) target = $region44
      $region43: #{cnns_predictor_forward.1} parent=5 // pred_region
        %s226 = ssub.s32 %s12, 1
        %s227 = smul.u32 4, %s17
        %s228 = ssub.s32 7, %s227
        %p229 = scmp.lt.s32.totalorder %s228, 4
        %s230 = scalar_select %p229, %s228, 4
        %s231 = smul.u32 8, %s230
        %p232 = scmp.lt.s32.totalorder %s227, 6
        %s233 = scalar_select %p232, %s227, 6
        %s234 = smul.addr %s233, 8
        %s235 = scalar_lea.vmem %s0, %s234
        %p236 = pneg %p38
        %p237 = pneg %p35
        %p238 = pneg %p59
        %p239 = pneg %p56
        %p240 = pneg %p80
        %p241 = pneg %p77
        %p242 = pneg %p101
        %p243 = pneg %p98
        %p244 = pneg %p122
        %p245 = pneg %p119
        %p246 = pneg %p143
        %p247 = pneg %p140
        %p248 = pneg %p169
        %p249 = pneg %p166
        %s250 = sand.u32 %s156, 1
        %s251 = sand.u32 %s156, 1
        %s252 = smul.addr %s251, 32
        %s253 = scalar_lea.vmem [#allocation2], %s252
        %s254 = smul.u32 4, %s17
        %s255 = ssub.s32 7, %s254
        %p256 = scmp.lt.s32.totalorder %s255, 4
        %s257 = scalar_select %p256, %s255, 4
        %s258 = smul.u32 8, %s257
        %p259 = scmp.lt.s32.totalorder %s254, 6
        %s260 = scalar_select %p259, %s254, 6
        %s261 = smul.addr %s260, 8
        %s262 = scalar_lea.vmem %s0, %s261
        %s263 = smul.u32 4, %s17
        %s264 = ssub.s32 7, %s263
        %p265 = scmp.lt.s32.totalorder %s264, 4
        %s266 = scalar_select %p265, %s264, 4
        %s267 = smul.u32 8, %s266
        %s268 = smul.u32 4, %s17
        %s269 = ssub.s32 7, %s268
        %p270 = scmp.lt.s32.totalorder %s269, 4
        %s271 = scalar_select %p270, %s269, 4
        %s272 = smul.u32 8, %s271
        %v273 = vld [vmem:[%s262] sm:$0xff]
        %v274 = vld [vmem:[%s262 + $0x8] sm:$0xff]
        %v275 = vld [vmem:[%s262 + $0x10] sm:$0xff]
        %v276 = vld [vmem:[%s262 + $0x18] sm:$0xff]
        %v277 = vld [vmem:[%s1] sm:$0x1]
        %279 = vset.pattern.permute.xlu0 0
        %280 = vperm.xlu0 %279, %v273
        %v281 = vpop.permute.xlu0 %280
        %284 = vset.pattern.permute.xlu0 0
        %285 = vperm.xlu0 %284, %v274
        %v286 = vpop.permute.xlu0 %285
        %289 = vset.pattern.permute.xlu0 0
        %290 = vperm.xlu0 %289, %v275
        %v291 = vpop.permute.xlu0 %290
        %294 = vset.pattern.permute.xlu0 0
        %295 = vperm.xlu0 %294, %v276
        %v296 = vpop.permute.xlu0 %295
        %v299 = vperm.slane %v277, 0
        %v301 = vmul.f32 %v281, %v299
        %v302 = vmul.f32 %v286, %v299
        %v303 = vmul.f32 %v291, %v299
        %v304 = vmul.f32 %v296, %v299
        %v305 = vmax.f32 %v301, 0.0
        %v306 = vmax.f32 %v302, 0.0
        %v307 = vmax.f32 %v303, 0.0
        %v308 = vmax.f32 %v304, 0.0
        %v309 = vld [vmem:[%s2] sm:$0xff]
        %v310 = vld [vmem:[%s2 + $0x8] sm:$0xff]
        %v311 = vld [vmem:[%s2 + $0x10] sm:$0xff]
        %v312 = vld [vmem:[%s2 + $0x18] sm:$0xff]
        %v313 = vld [vmem:[%s2 + $0x20] sm:$0xff]
        %v314 = vld [vmem:[%s2 + $0x28] sm:$0xff]
        %v315 = vld [vmem:[%s2 + $0x30] sm:$0xff]
        %v316 = vld [vmem:[%s2 + $0x38] sm:$0xff]
        %v317 = vld [vmem:[%s3] sm:$0x1]
        %v319 = vperm.slane %v317, 0
        %vm321 = vcmask 523264
        %v323 = vsel %vm321, %v305, 0
        %v326 = vsel %vm321, %v306, 0
        %v329 = vsel %vm321, %v307, 0
        %v332 = vsel %vm321, %v308, 0
        %334 = vmatpush.msra.mxu0 0.0
        %335 = vmatpush.msra.mxu0 0.0
        %336 = vmatpush.msra.mxu0 0.0
        %337 = vmatpush.msra.mxu0 0.0
        %338 = vmatpush.msra.mxu0 0.0
        %339 = vmatpush.msra.mxu0 0.0
        %340 = vmatpush.msra.mxu0 0.0
        %341 = vmatpush.msra.mxu0 0.0
        %342 = vmatpush.msra.mxu0 %v316
        %343 = vmatpush.msra.mxu0 %v315
        %344 = vmatpush.msra.mxu0 %v314
        %345 = vmatpush.msra.mxu0 %v313
        %346 = vmatpush.msra.mxu0 %v312
        %347 = vmatpush.msra.mxu0 %v311
        %348 = vmatpush.msra.mxu0 %v310
        %349 = vmatpush.msra.mxu0 %v309
        %350 = vmatmul.f32.gmra.mxu0 %v323
        %v351 = vpop.f32.mrf.mxu0
        %v352 = vadd.f32 %v319, %v351
        %353 = vmatmul.f32.gmra.mxu0 %v326
        %v354 = vpop.f32.mrf.mxu0
        %v355 = vadd.f32 %v319, %v354
        %356 = vmatmul.f32.gmra.mxu0 %v329
        %v357 = vpop.f32.mrf.mxu0
        %v358 = vadd.f32 %v319, %v357
        %359 = vmatmul.f32.gmra.mxu0 %v332
        %v360 = vpop.f32.mrf.mxu0
        %v361 = vadd.f32 %v319, %v360
        %362 = vdwg.mxu0
        %v363 = vmax.f32 %v352, 0.0
        %v364 = vmax.f32 %v355, 0.0
        %v365 = vmax.f32 %v358, 0.0
        %v366 = vmax.f32 %v361, 0.0
        %v367 = vld [vmem:[%s4] sm:$0xff]
        %v368 = vld [vmem:[%s4 + $0x8] sm:$0xff]
        %v369 = vld [vmem:[%s4 + $0x10] sm:$0xff]
        %v370 = vld [vmem:[%s4 + $0x18] sm:$0xff]
        %v371 = vld [vmem:[%s5] sm:$0x1]
        %v373 = vperm.slane %v371, 0
        %vm375 = vcmask 261120
        %v377 = vsel %vm375, %v363, 0
        %v380 = vsel %vm375, %v364, 0
        %v383 = vsel %vm375, %v365, 0
        %v386 = vsel %vm375, %v366, 0
        %388 = vmatpush.msra.mxu0 0.0
        %389 = vmatpush.msra.mxu0 0.0
        %390 = vmatpush.msra.mxu0 0.0
        %391 = vmatpush.msra.mxu0 0.0
        %392 = vmatpush.msra.mxu0 0.0
        %393 = vmatpush.msra.mxu0 0.0
        %394 = vmatpush.msra.mxu0 0.0
        %395 = vmatpush.msra.mxu0 0.0
        %396 = vmatpush.msra.mxu0 0.0
        %397 = vmatpush.msra.mxu0 0.0
        %398 = vmatpush.msra.mxu0 0.0
        %399 = vmatpush.msra.mxu0 0.0
        %400 = vmatpush.msra.mxu0 %v370
        %401 = vmatpush.msra.mxu0 %v369
        %402 = vmatpush.msra.mxu0 %v368
        %403 = vmatpush.msra.mxu0 %v367
        %404 = vmatmul.f32.gmra.mxu0 %v377
        %v405 = vpop.f32.mrf.mxu0
        %v406 = vadd.f32 %v373, %v405
        %407 = vmatmul.f32.gmra.mxu0 %v380
        %v408 = vpop.f32.mrf.mxu0
        %v409 = vadd.f32 %v373, %v408
        %410 = vmatmul.f32.gmra.mxu0 %v383
        %v411 = vpop.f32.mrf.mxu0
        %v412 = vadd.f32 %v373, %v411
        %413 = vmatmul.f32.gmra.mxu0 %v386
        %v414 = vpop.f32.mrf.mxu0
        %v415 = vadd.f32 %v373, %v414
        %416 = vdwg.mxu0
        %vm417 = vcmask 64512
        %418 = vst.msk [vmem:[%s253] sm:$0xff] %vm417, %v406
        %419 = vst.msk [vmem:[%s253 + $0x8] sm:$0xff] %vm417, %v409
        %420 = vst.msk [vmem:[%s253 + $0x10] sm:$0xff] %vm417, %v412
        %421 = vst.msk [vmem:[%s253 + $0x18] sm:$0xff] %vm417, %v415
        %s422 = sand.u32 %s156, 1
        %s423 = sand.u32 %s156, 1
        %s424 = smul.addr %s423, 32
        %s425 = scalar_lea.vmem [#allocation2], %s424
        // Predicated region
        $region45: #{cnns_predictor_forward.1} parent=43 // pred_check
          %p426 = pneg %p166
        $region46: #{cnns_predictor_forward.1} parent=43 // pred_check_branch
          %428 = sbr.rel (%p426) target = $region48
        $region47: #{cnns_predictor_forward.1} parent=43 // pred_region
          %s429 = smul.u32 4, %s17
          %s430 = ssub.s32 7, %s429
          %p431 = scmp.lt.s32.totalorder %s430, 4
          %s432 = scalar_select %p431, %s430, 4
          %s433 = smul.u32 8, %s432
          %p434 = scmp.ne.s32.totalorder 0, %s433
          %s435 = smul.addr %s429, 8
          %s436 = scalar_lea.vmem %s6, %s435
          // Predicated region
          $region49: #{cnns_predictor_forward.1} parent=47 // pred_check
            %p437 = pneg %p434
          $region50: #{cnns_predictor_forward.1} parent=47 // pred_check_branch
            %439 = sbr.rel (%p437) target = $region52
          $region51: #{cnns_predictor_forward.1} parent=47 // pred_region
            // Predicated region
            $region53: #{cnns_predictor_forward.1} parent=51 // pred_check
              _
            $region54: #{cnns_predictor_forward.1} parent=51 // pred_check_branch
              %441 = sbr.rel (0) target = $region56
            $region55: #{cnns_predictor_forward.1} parent=51 // pred_region
              // Predicated region
              $region75: #{cnns_predictor_forward.1} parent=55 // pred_check
                _
              $region76: #{cnns_predictor_forward.1} parent=55 // pred_check_branch
                %497 = sbr.rel (0) target = $region78
              $region77: #{cnns_predictor_forward.1} parent=55 // pred_region
                %s498 = sshrl.u32 %s432, 2
                // While loop
                $region79: #{cnns_predictor_forward.1} parent=77 // loop_pre_header
                  _
                $region80: #{cnns_predictor_forward.1} parent=77 // loop_header
                  %s500 = sphi 0, %s502
                  %p501 = scmp.ge.s32.totalorder %s500, %s498
                  %s505 = sphi 0, %s518
                  %s506 = sphi %s425, %s521
                  %s507 = sphi %s436, %s522
                $region81: #{cnns_predictor_forward.1} parent=77 // loop_header_branch
                  %504 = sbr.rel (%p501) target = $region85
                $region82: #{cnns_predictor_forward.1} parent=77 // loop_body
                  %v508 = vld [vmem:[%s506] sm:$0xff]
                  %509 = vst [vmem:[%s507] sm:$0xff] %v508
                  %v510 = vld [vmem:[%s506 + $0x8] sm:$0xff]
                  %511 = vst [vmem:[%s507 + $0x8] sm:$0xff] %v510
                  %v512 = vld [vmem:[%s506 + $0x10] sm:$0xff]
                  %513 = vst [vmem:[%s507 + $0x10] sm:$0xff] %v512
                  %v514 = vld [vmem:[%s506 + $0x18] sm:$0xff]
                  %515 = vst [vmem:[%s507 + $0x18] sm:$0xff] %v514
                  %s516 = sadd.s32 1, %s505
                  %p517 = scmp.ge.s32.totalorder %s516, %s498
                  %s518 = scalar_select %p517, 0, %s516
                  %s519 = smul.u32 %s518, 32
                  %s520 = smul.u32 %s518, 32
                  %s521 = scalar_lea.vmem %s425, %s519 [#allocation2]
                  %s522 = scalar_lea.vmem %s436, %s520
                $region83: #{cnns_predictor_forward.1} parent=77 // loop_footer
                  %s502 = sadd.s32 %s500, 1
                $region84: #{cnns_predictor_forward.1} parent=77 // loop_footer_branch
                  %499 = sbr.rel target = $region80
                $region85: #{cnns_predictor_forward.1} parent=77 // loop_exit
                  _
                %s523 = sshrl.u32 %s432, 2
                %s524 = sand.u32 %s432, 3
                %s525 = smul.u32 %s523, 4
                %s526 = smul.u32 8, %s525
                %s527 = scalar_lea.vmem %s425, %s526 [#allocation2]
                %s528 = smul.u32 8, %s525
                %s529 = scalar_lea.vmem %s436, %s528
                // While loop
                $region86: #{cnns_predictor_forward.1} parent=77 // loop_pre_header
                  _
                $region87: #{cnns_predictor_forward.1} parent=77 // loop_header
                  %s531 = sphi 0, %s533
                  %p532 = scmp.ge.s32.totalorder %s531, %s524
                  %s536 = sphi 0, %s543
                  %s537 = sphi %s527, %s546
                  %s538 = sphi %s529, %s547
                $region88: #{cnns_predictor_forward.1} parent=77 // loop_header_branch
                  %535 = sbr.rel (%p532) target = $region92
                $region89: #{cnns_predictor_forward.1} parent=77 // loop_body
                  %v539 = vld [vmem:[%s537] sm:$0xff]
                  %540 = vst [vmem:[%s538] sm:$0xff] %v539
                  %s541 = sadd.s32 1, %s536
                  %p542 = scmp.ge.s32.totalorder %s541, %s524
                  %s543 = scalar_select %p542, 0, %s541
                  %s544 = smul.u32 %s543, 8
                  %s545 = smul.u32 %s543, 8
                  %s546 = scalar_lea.vmem %s527, %s544 [#allocation2]
                  %s547 = scalar_lea.vmem %s529, %s545
                $region90: #{cnns_predictor_forward.1} parent=77 // loop_footer
                  %s533 = sadd.s32 %s531, 1
                $region91: #{cnns_predictor_forward.1} parent=77 // loop_footer_branch
                  %530 = sbr.rel target = $region87
                $region92: #{cnns_predictor_forward.1} parent=77 // loop_exit
                  _
              $region78: #{cnns_predictor_forward.1} parent=55 // pred_fallthru
                _
              // Predicated region
              $region93: #{cnns_predictor_forward.1} parent=55 // pred_check
                _
              $region94: #{cnns_predictor_forward.1} parent=55 // pred_check_branch
                %549 = sbr.rel target = $region96
              $region95: #{cnns_predictor_forward.1} parent=55 // pred_region
                _
              $region96: #{cnns_predictor_forward.1} parent=55 // pred_fallthru
                _
            $region56: #{cnns_predictor_forward.1} parent=51 // pred_fallthru
              _
            // Predicated region
            $region57: #{cnns_predictor_forward.1} parent=51 // pred_check
              _
            $region58: #{cnns_predictor_forward.1} parent=51 // pred_check_branch
              %443 = sbr.rel target = $region60
            $region59: #{cnns_predictor_forward.1} parent=51 // pred_region
              %s445 = ssub.s32 256, 1
              %s446 = sshrl.u32 %s432, 2
              // While loop
              $region61: #{cnns_predictor_forward.1} parent=59 // loop_pre_header
                _
              $region62: #{cnns_predictor_forward.1} parent=59 // loop_header
                %s448 = sphi 0, %s450
                %p449 = scmp.ge.s32.totalorder %s448, %s446
                %s453 = sphi 0, %s466
                %s454 = sphi %s425, %s469
                %s455 = sphi %s436, %s470
              $region63: #{cnns_predictor_forward.1} parent=59 // loop_header_branch
                %452 = sbr.rel (%p449) target = $region67
              $region64: #{cnns_predictor_forward.1} parent=59 // loop_body
                %v456 = vld [vmem:[%s454] sm:%s445]
                %457 = vst [vmem:[%s455] sm:%s445] %v456
                %v458 = vld [vmem:[%s454 + $0x8] sm:%s445]
                %459 = vst [vmem:[%s455 + $0x8] sm:%s445] %v458
                %v460 = vld [vmem:[%s454 + $0x10] sm:%s445]
                %461 = vst [vmem:[%s455 + $0x10] sm:%s445] %v460
                %v462 = vld [vmem:[%s454 + $0x18] sm:%s445]
                %463 = vst [vmem:[%s455 + $0x18] sm:%s445] %v462
                %s464 = sadd.s32 1, %s453
                %p465 = scmp.ge.s32.totalorder %s464, %s446
                %s466 = scalar_select %p465, 0, %s464
                %s467 = smul.u32 %s466, 32
                %s468 = smul.u32 %s466, 32
                %s469 = scalar_lea.vmem %s425, %s467 [#allocation2]
                %s470 = scalar_lea.vmem %s436, %s468
              $region65: #{cnns_predictor_forward.1} parent=59 // loop_footer
                %s450 = sadd.s32 %s448, 1
              $region66: #{cnns_predictor_forward.1} parent=59 // loop_footer_branch
                %447 = sbr.rel target = $region62
              $region67: #{cnns_predictor_forward.1} parent=59 // loop_exit
                _
              %s471 = sshrl.u32 %s432, 2
              %s472 = sand.u32 %s432, 3
              %s473 = smul.u32 %s471, 4
              %s474 = smul.u32 8, %s473
              %s475 = scalar_lea.vmem %s425, %s474 [#allocation2]
              %s476 = smul.u32 8, %s473
              %s477 = scalar_lea.vmem %s436, %s476
              // While loop
              $region68: #{cnns_predictor_forward.1} parent=59 // loop_pre_header
                _
              $region69: #{cnns_predictor_forward.1} parent=59 // loop_header
                %s479 = sphi 0, %s481
                %p480 = scmp.ge.s32.totalorder %s479, %s472
                %s484 = sphi 0, %s491
                %s485 = sphi %s475, %s494
                %s486 = sphi %s477, %s495
              $region70: #{cnns_predictor_forward.1} parent=59 // loop_header_branch
                %483 = sbr.rel (%p480) target = $region74
              $region71: #{cnns_predictor_forward.1} parent=59 // loop_body
                %v487 = vld [vmem:[%s485] sm:%s445]
                %488 = vst [vmem:[%s486] sm:%s445] %v487
                %s489 = sadd.s32 1, %s484
                %p490 = scmp.ge.s32.totalorder %s489, %s472
                %s491 = scalar_select %p490, 0, %s489
                %s492 = smul.u32 %s491, 8
                %s493 = smul.u32 %s491, 8
                %s494 = scalar_lea.vmem %s475, %s492 [#allocation2]
                %s495 = scalar_lea.vmem %s477, %s493
              $region72: #{cnns_predictor_forward.1} parent=59 // loop_footer
                %s481 = sadd.s32 %s479, 1
              $region73: #{cnns_predictor_forward.1} parent=59 // loop_footer_branch
                %478 = sbr.rel target = $region69
              $region74: #{cnns_predictor_forward.1} parent=59 // loop_exit
                _
            $region60: #{cnns_predictor_forward.1} parent=51 // pred_fallthru
              _
          $region52: #{cnns_predictor_forward.1} parent=47 // pred_fallthru
            _
          %550 = vnop
        $region48: #{cnns_predictor_forward.1} parent=43 // pred_fallthru
          _
      $region44: #{cnns_predictor_forward.1} parent=5 // pred_fallthru
        _
      %p551 = scmp.le.s32.totalorder 2, %s12
      // Predicated region
      $region97: #{cnns_predictor_forward.1} parent=5 // pred_check
        %p552 = pneg %p551
      $region98: #{cnns_predictor_forward.1} parent=5 // pred_check_branch
        %554 = sbr.rel (%p552) target = $region100
      $region99: #{cnns_predictor_forward.1} parent=5 // pred_region
        %s555 = ssub.s32 %s12, 2
        // Predicated region
        $region101: #{cnns_predictor_forward.1} parent=99 // pred_check
          %p556 = pneg %p172
        $region102: #{cnns_predictor_forward.1} parent=99 // pred_check_branch
          %558 = sbr.rel (%p556) target = $region104
        $region103: #{cnns_predictor_forward.1} parent=99 // pred_region
          %s559 = sand.u32 %s157, 1
          %s560 = sand.u32 %s157, 1
          %s561 = smul.addr %s560, 32
          %s562 = scalar_lea.vmem [#allocation2], %s561
        $region104: #{cnns_predictor_forward.1} parent=99 // pred_fallthru
          _
      $region100: #{cnns_predictor_forward.1} parent=5 // pred_fallthru
        _
    $region6: #{cnns_predictor_forward.1} parent=1 // loop_footer
      %s16 = sadd.s32 1, %s12
    $region7: #{cnns_predictor_forward.1} parent=1 // loop_footer_branch
      %11 = sbr.rel target = $region3
    $region8: #{cnns_predictor_forward.1} parent=1 // loop_exit
      _

</llo_original>
